<compile_context>
chip_gen: v6e
topology: v6e:2x2x1
jax: 0.10.0
libtpu: 0.0.40
codegen_flags: <defaults>
</compile_context>

<pallas_src>
import jax
import jax.numpy as jnp
from jax.experimental import pallas as pl
from jax.experimental.pallas import tpu as pltpu


def _copy_prefix_kernel(x_ref, o_ref):
    # x_ref: (Rt, Lt_in) VMEM tile; o_ref: (Rt, Lt_out) with Lt_out <= Lt_in.
    # In the tiled path Lt_in == Lt_out so the slice is a no-op full copy.
    o_ref[...] = x_ref[:, : o_ref.shape[-1]]


def _pick_lane_tile(l_out: int) -> int:
    for t in (1024, 512, 256, 128):
        if l_out >= t:
            return t
    return l_out  # l_out < 128: single full-width output tile


def chomp1d(x: jax.Array, chomp_size: int) -> jax.Array:
    """Equivalent of PyTorch Chomp1d.forward: x[:, :, :-chomp_size]."""
    assert chomp_size > 0, "chomp_size must be positive (matches PyTorch usage)"
    n, c, l = x.shape
    l_out = l - chomp_size
    assert l_out > 0

    # Flatten batch*channels into rows; reshape is layout-preserving (row-major).
    r = n * c
    x2 = x.reshape(r, l)

    itemsize = jnp.dtype(x.dtype).itemsize
    # Row tile: full R when small (block == full dim), else 256 (multiple of
    # the sublane tile for f32/bf16/int8).
    rt = r if r <= 256 else 256
    lt = _pick_lane_tile(l_out)

    if lt >= 128:
        # Optimized path: matching in/out blocks -> the chomped tail is never
        # DMA'd from HBM; 128-multiple lane tiles keep stores unmasked except
        # on the final ragged tile (handled automatically by Pallas).
        in_block = (rt, lt)
        bytes_accessed = 2 * r * l_out * itemsize
    else:
        # Small-L fallback: block dims equal the full array dims; the kernel
        # slices the prefix in-register.
        in_block = (rt, l)
        bytes_accessed = r * (l + l_out) * itemsize

    grid = (pl.cdiv(r, rt), pl.cdiv(l_out, lt))

    out2 = pl.pallas_call(
        _copy_prefix_kernel,
        out_shape=jax.ShapeDtypeStruct((r, l_out), x.dtype),
        grid_spec=pltpu.PrefetchScalarGridSpec(
            num_scalar_prefetch=0,
            grid=grid,
            in_specs=[pl.BlockSpec(in_block, lambda ri, li: (ri, li))],
            out_specs=pl.BlockSpec((rt, lt), lambda ri, li: (ri, li)),
        ),
        compiler_params=pltpu.CompilerParams(
            dimension_semantics=("parallel", "parallel"),
        ),
        cost_estimate=pl.CostEstimate(
            flops=0, transcendentals=0, bytes_accessed=bytes_accessed
        ),
    )(x2)

    return out2.reshape(n, c, l_out)


if __name__ == "__main__":
    key = jax.random.PRNGKey(0)

    def _check(shape, chomp, i):
        x = jax.random.normal(jax.random.fold_in(key, i), shape, dtype=jnp.float32)
        out = jax.block_until_ready(chomp1d(x, chomp))
        ref = x[:, :, :-chomp]
        assert out.shape == ref.shape, (out.shape, ref.shape)
        assert out.dtype == x.dtype
        assert jnp.array_equal(out, ref), f"mismatch vs reference slice for {shape}"

    # Primary small case (matches the module's typical small-shape usage).
    _check((2, 4, 16), 3, 0)
    # Exercise the 128-lane tiled path with a ragged final lane tile.
    _check((2, 16, 300), 5, 1)
    # Exercise row tiling (N*C > 256) plus ragged row and lane edge tiles.
    _check((4, 80, 200), 7, 2)

    print("KERNEL_OK")
</pallas_src>

<mosaic_0001>
module attributes {stable_mosaic.version = 11 : i64} {
  func.func @_copy_prefix_kernel(%arg0: i32, %arg1: i32, %arg2: memref<8x16xf32, #tpu.memory_space<vmem>>, %arg3: memref<8x13xf32, #tpu.memory_space<vmem>>) attributes {dimension_semantics = [#tpu.dimension_semantics<parallel>, #tpu.dimension_semantics<parallel>], iteration_bounds = array<i64: 1, 1>, scalar_prefetch = 0 : i64, scratch_operands = 0 : i64, tpu.core_type = #tpu.core_type<tc>, window_params = [{transform_indices = @transform_0, window_bounds = array<i64: 8, 16>}, {transform_indices = @transform_1, window_bounds = array<i64: 8, 13>}]} {
    %c0 = arith.constant 0 : index
    %c0_0 = arith.constant 0 : index
    %0 = vector.load %arg2[%c0, %c0_0] : memref<8x16xf32, #tpu.memory_space<vmem>>, vector<8x13xf32>
    %c0_1 = arith.constant 0 : index
    %c0_2 = arith.constant 0 : index
    %1 = vector.load %arg3[%c0_1, %c0_2] : memref<8x13xf32, #tpu.memory_space<vmem>>, vector<8x13xf32>
    tpu.vector_store %arg3[%c0_1, %c0_2], %0 {strides = array<i32>} : memref<8x13xf32, #tpu.memory_space<vmem>>, vector<8x13xf32>,
    return
  }
  func.func @transform_0(%arg0: i32, %arg1: i32) -> (i32, i32) {
    %c0_i32 = arith.constant 0 : i32
    return %arg0, %arg1 : i32, i32
  }
  func.func @transform_1(%arg0: i32, %arg1: i32) -> (i32, i32) {
    %c0_i32 = arith.constant 0 : i32
    return %arg0, %arg1 : i32, i32
  }
}

</mosaic_0001>

<llo_original>
// kernel: tpu_custom_call.1
$region0: #{tpu_custom_call.1}
  #allocation0 [shape = 'u32[]', space=smem, size = 0x4, offset = 0x4, fixed_abs, tag = 'smem constant byte address 0x4 - core index']
  #allocation1 [shape = 'u32[144,128]{1,0:T(1,128)}', space=vmem, size = 0x12000, scoped, tag = 'internal scratch']
  %s0 = inlined_call_operand.hbm [shape: f32[8,16], index: 0, kind: input, shape index: {}]
  %s1 = inlined_call_operand.hbm [shape: f32[8,13], index: 1, kind: output, shape index: {}]
  %s2 = sld [smem:[#allocation0]]
  $region18: #{tpu_custom_call.1} parent=0
    _
  %s4 = ssub.s32 1, %s2
  %s5 = scalar_select 0, %s4, %s2
  $region1: #{tpu_custom_call.1} parent=0
    #allocation2 [shape = 'u8[4096]{0}', space=vmem, size = 0x1000, scoped, tag = 'input window, operand 0, single buffered']
    #allocation3 [shape = 's32[1]{0}', space=sflag, size = 0x4, scoped, tag = 'scoped memory for tpu_custom_call.1']
    #allocation4 [shape = 's32[1]{0}', space=sflag, size = 0x4, scoped, tag = 'scoped memory for tpu_custom_call.1']
    #allocation5 [shape = 'u8[4096]{0}', space=vmem, size = 0x1000, scoped, tag = 'output window, operand 0, single buffered']
    %6 = vsyncpa [#allocation3], 0
    %7 = vsyncpa [#allocation4], 0
    // Predicated region
    $region2: #{tpu_custom_call.1} parent=1 // pred_check
      _
    $region3: #{tpu_custom_call.1} parent=1 // pred_check_branch
      %9 = sbr.rel (0) target = $region5
    $region4: #{tpu_custom_call.1} parent=1 // pred_region
      %s11 = ssub.s32 128, 128
      %12 = vsyncadd [#allocation3], %s11
      %s14 = sshll.u32 [#allocation2], 4
      %s15 = int_to_ptr.vmem [resolvable:$true] %s14
      %17 = dma.hbm_to_vmem [thread:$0]  %s0, 128, %s15, [#allocation3]
    $region5: #{tpu_custom_call.1} parent=1 // pred_fallthru
      _
    // Predicated region
    $region6: #{tpu_custom_call.1} parent=1 // pred_check
      _
    $region7: #{tpu_custom_call.1} parent=1 // pred_check_branch
      %19 = sbr.rel (0) target = $region9
    $region8: #{tpu_custom_call.1} parent=1 // pred_region
      %20 = dma.done [#allocation3], 128
    $region9: #{tpu_custom_call.1} parent=1 // pred_fallthru
      _
    %v21 = vld [vmem:[#allocation2] sm:$0xff]
    %vm22 = vcmask 105472
    %23 = vst.msk [vmem:[#allocation5] sm:$0xff] %vm22, %v21
    // Predicated region
    $region10: #{tpu_custom_call.1} parent=1 // pred_check
      _
    $region11: #{tpu_custom_call.1} parent=1 // pred_check_branch
      %25 = sbr.rel (0) target = $region13
    $region12: #{tpu_custom_call.1} parent=1 // pred_region
      %s27 = ssub.s32 128, 128
      %28 = vsyncadd [#allocation4], %s27
      %s30 = sshll.u32 [#allocation5], 4
      %s31 = int_to_ptr.vmem [resolvable:$true] %s30
      %33 = dma.vmem_to_hbm [thread:$0]  %s31, 128, %s1, [#allocation4]
    $region13: #{tpu_custom_call.1} parent=1 // pred_fallthru
      _
    // Predicated region
    $region14: #{tpu_custom_call.1} parent=1 // pred_check
      _
    $region15: #{tpu_custom_call.1} parent=1 // pred_check_branch
      %35 = sbr.rel (0) target = $region17
    $region16: #{tpu_custom_call.1} parent=1 // pred_region
      %36 = dma.done [#allocation4], 128
    $region17: #{tpu_custom_call.1} parent=1 // pred_fallthru
      _
    %37 = vsyncpa [#allocation3], 1
    %38 = vsyncpa [#allocation4], 1

</llo_original>
